<compile_context>
chip_gen: v7x
topology: tpu7x:2x2x1
jax: 0.10.0
libtpu: 0.0.40
codegen_flags: <defaults>
</compile_context>

<pallas_src>
import jax
import jax.numpy as jnp
from jax.experimental import pallas as pl
from jax.experimental.pallas import tpu as pltpu


def _round_up(x, m):
    return ((x + m - 1) // m) * m


def _pool_kernel(x_ref, lens_ref, w_ref, b_ref, o_ref):
    """x_ref:(SB*T_max, D_in) bf16 | lens_ref:(SB,1) i32 | w_ref:(D_in, D_out_pad) bf16
    b_ref:(1, D_out_pad) f32 | o_ref:(SB, D_out_pad) f32."""
    rows = x_ref.shape[0]
    sb, d_out = o_ref.shape
    t_max = rows // sb

    # One big MXU matmul for all SB sentences in this block (f32 accumulate).
    y = jnp.dot(x_ref[...], w_ref[...], preferred_element_type=jnp.float32)
    y = y.reshape(sb, t_max, d_out)                         # (SB, T_max, D_out_pad)

    # Per-sentence token mask: (SB, T_max, 1) iota vs (SB, 1, 1) lengths,
    # broadcast along the lane axis inside the where (cheap VPU work).
    lens = lens_ref[...]                                    # (SB, 1) int32
    tok = jax.lax.broadcasted_iota(jnp.int32, (sb, t_max, 1), 1)
    y = jnp.where(tok < lens.reshape(sb, 1, 1), y, -jnp.inf)

    pooled = jnp.max(y, axis=1)                             # (SB, D_out_pad), f32

    # Bias is constant over tokens -> add once after the max.
    # Clamp empty / tail-padded sentence slots to 0 rather than emitting -inf.
    out = jnp.where(lens > 0, pooled + b_ref[...], 0.0)
    o_ref[...] = out.astype(o_ref.dtype)


def pooled_linear_max(x_flat, lengths_2d, w_t_pad, b_pad, *, sb, t_max):
    """x_flat: (S_pad*T_max, D_in) bf16; lengths_2d: (S_pad, 1) int32;
    w_t_pad: (D_in, D_out_pad) bf16; b_pad: (1, D_out_pad) f32.
    Returns (S_pad, D_out_pad) f32 per-sentence pooled Linear output."""
    rows_pad, d_in = x_flat.shape
    s_pad = rows_pad // t_max
    d_out_pad = w_t_pad.shape[1]
    n_blocks = s_pad // sb

    cost = pl.CostEstimate(
        flops=2 * s_pad * t_max * d_in * d_out_pad,
        transcendentals=0,
        bytes_accessed=(x_flat.size * x_flat.dtype.itemsize
                        + w_t_pad.size * w_t_pad.dtype.itemsize
                        + b_pad.size * 4
                        + lengths_2d.size * 4
                        + s_pad * d_out_pad * 4),
    )

    return pl.pallas_call(
        _pool_kernel,
        out_shape=jax.ShapeDtypeStruct((s_pad, d_out_pad), jnp.float32),
        grid=(n_blocks,),
        in_specs=[
            pl.BlockSpec((sb * t_max, d_in), lambda i: (i, 0)),   # x slab
            pl.BlockSpec((sb, 1), lambda i: (i, 0)),              # lengths
            pl.BlockSpec((d_in, d_out_pad), lambda i: (0, 0)),    # W^T (resident)
            pl.BlockSpec((1, d_out_pad), lambda i: (0, 0)),       # bias (resident)
        ],
        out_specs=pl.BlockSpec((sb, d_out_pad), lambda i: (i, 0)),
        compiler_params=pltpu.CompilerParams(
            dimension_semantics=("parallel",)),   # disjoint output blocks -> 2 TCs on v7x
        cost_estimate=cost,
    )(x_flat, lengths_2d, w_t_pad, b_pad)


def pooling_layer_forward(inputs, weight, bias):
    """inputs: list (batch) of lists (sentences) of (n_tokens, input_dim) arrays.
    weight: (output_dim, input_dim) as in nn.Linear; bias: (output_dim,).
    Returns (batch, max_sents, output_dim), zero-padded like torch pad_sequence."""
    d_out, d_in = weight.shape

    # TODO(synk): ragged Python-list inputs have no Pallas equivalent; the packing
    # below is host-side glue (bucketed T_max keeps retracing/recompiles bounded).
    sents = [s for seq in inputs for s in seq]
    s_total = len(sents)
    lengths = [int(s.shape[0]) for s in sents]

    # Bucket the token dim to a multiple of 8 so in-kernel reshapes/reductions
    # are tile-aligned, and pick a sentence-block size SB (multiple of 8) that
    # targets >= 256 matmul rows per grid step without over-padding tiny inputs.
    t_max = _round_up(max(lengths), 8)
    sb = max(8, min(_round_up(pl.cdiv(256, t_max), 8), _round_up(s_total, 8)))
    s_pad = _round_up(s_total, sb)
    d_out_pad = _round_up(d_out, 128)

    # Pack all sentences into one bf16 slab (S_pad*T_max, D_in).
    x_sent = jnp.stack(
        [jnp.pad(s, ((0, t_max - s.shape[0]), (0, 0))) for s in sents], axis=0)
    if s_pad > s_total:
        x_sent = jnp.pad(x_sent, ((0, s_pad - s_total), (0, 0), (0, 0)))
    x_flat = x_sent.reshape(s_pad * t_max, d_in).astype(jnp.bfloat16)

    lens_2d = jnp.zeros((s_pad, 1), jnp.int32).at[:s_total, 0].set(
        jnp.array(lengths, jnp.int32))

    # Lane-dense padded weights / bias (pad cols are zero -> sliced off below).
    w_t_pad = jnp.pad(weight.T, ((0, 0), (0, d_out_pad - d_out))).astype(jnp.bfloat16)
    b_pad = jnp.pad(bias, (0, d_out_pad - d_out)).reshape(1, d_out_pad).astype(jnp.float32)

    pooled = pooled_linear_max(
        x_flat, lens_2d, w_t_pad, b_pad, sb=sb, t_max=t_max)[:s_total, :d_out]

    # pad_sequence(batch_first=True) re-assembly with a single vectorized scatter.
    batch = len(inputs)
    seq_lens = [len(seq) for seq in inputs]
    max_sents = max(seq_lens)
    b_idx = jnp.array([b for b, n in enumerate(seq_lens) for _ in range(n)], jnp.int32)
    s_idx = jnp.array([j for n in seq_lens for j in range(n)], jnp.int32)
    out = jnp.zeros((batch, max_sents, d_out), dtype=jnp.float32)
    out = out.at[b_idx, s_idx].set(pooled)
    return out


if __name__ == "__main__":
    input_dim, output_dim = 16, 32
    key = jax.random.PRNGKey(0)
    kw, kb, *kx = jax.random.split(key, 8)

    # Deterministic "Linear" parameters (same shapes as nn.Linear(input_dim, output_dim)).
    weight = jax.random.normal(kw, (output_dim, input_dim), jnp.float32) * 0.1
    bias = jax.random.normal(kb, (output_dim,), jnp.float32) * 0.1

    # inputs: 2 sequences; seq0 has 3 sentences, seq1 has 2 sentences,
    # each sentence has a variable number of token rows of input_dim features.
    tok_counts = [[5, 8, 3], [6, 4]]
    inputs = []
    ki = 0
    for seq_counts in tok_counts:
        seq = []
        for n in seq_counts:
            seq.append(jax.random.normal(kx[ki], (n, input_dim), jnp.float32))
            ki += 1
        inputs.append(seq)

    out = pooling_layer_forward(inputs, weight, bias)
    out = jax.block_until_ready(out)

    # Pure-JAX (f32) reference of the same semantics; tolerance covers the
    # bf16 input quantization used in the kernel's matmul.
    ref_rows = []
    for seq in inputs:
        rows = [jnp.max(s @ weight.T + bias, axis=0) for s in seq]
        ref_rows.append(jnp.stack(rows))
    max_sents = max(r.shape[0] for r in ref_rows)
    ref = jnp.stack([jnp.pad(r, ((0, max_sents - r.shape[0]), (0, 0))) for r in ref_rows])

    assert out.shape == (2, 3, output_dim), out.shape
    assert jnp.allclose(out, ref, atol=2e-2), float(jnp.max(jnp.abs(out - ref)))

    print("KERNEL_OK")
</pallas_src>

<mosaic_0001>
module attributes {stable_mosaic.version = 11 : i64} {
  func.func @_pool_kernel(%arg0: i32, %arg1: memref<64x16xbf16, #tpu.memory_space<vmem>>, %arg2: memref<8x1xi32, #tpu.memory_space<vmem>>, %arg3: memref<16x128xbf16, #tpu.memory_space<vmem>>, %arg4: memref<1x128xf32, #tpu.memory_space<vmem>>, %arg5: memref<8x128xf32, #tpu.memory_space<vmem>>) attributes {dimension_semantics = [#tpu.dimension_semantics<parallel>], iteration_bounds = array<i64: 1>, scalar_prefetch = 0 : i64, scratch_operands = 0 : i64, tpu.core_type = #tpu.core_type<tc>, window_params = [{transform_indices = @transform_0, window_bounds = array<i64: 64, 16>}, {transform_indices = @transform_1, window_bounds = array<i64: 8, 1>}, {pipeline_mode = #tpu.pipeline_mode<synchronous>, transform_indices = @transform_2, window_bounds = array<i64: 16, 128>}, {pipeline_mode = #tpu.pipeline_mode<synchronous>, transform_indices = @transform_3, window_bounds = array<i64: 1, 128>}, {transform_indices = @transform_4, window_bounds = array<i64: 8, 128>}]} {
    %c0 = arith.constant 0 : index
    %c0_0 = arith.constant 0 : index
    %0 = vector.load %arg1[%c0, %c0_0] : memref<64x16xbf16, #tpu.memory_space<vmem>>, vector<64x16xbf16>
    %c0_1 = arith.constant 0 : index
    %c0_2 = arith.constant 0 : index
    %1 = vector.load %arg3[%c0_1, %c0_2] : memref<16x128xbf16, #tpu.memory_space<vmem>>, vector<16x128xbf16>
    %cst = arith.constant dense<0.000000e+00> : vector<64x128xf32>
    %2 = tpu.matmul %0, %1, %cst {dimension_numbers = #tpu.dot_dimension_numbers<[1], [0], [0], [1], [0, 0, 1, 1], [], []>} : vector<64x16xbf16>, vector<16x128xbf16>, vector<64x128xf32> -> vector<64x128xf32>
    %3 = vector.shape_cast %2 : vector<64x128xf32> to vector<8x8x128xf32>
    %c0_3 = arith.constant 0 : index
    %c0_4 = arith.constant 0 : index
    %4 = vector.load %arg2[%c0_3, %c0_4] : memref<8x1xi32, #tpu.memory_space<vmem>>, vector<8x1xi32>
    %5 = tpu.iota {dimensions = array<i32: 1>} : vector<8x8x1xi32>
    %6 = vector.shape_cast %4 : vector<8x1xi32> to vector<8x1x1xi32>
    %7 = vector.broadcast %6 : vector<8x1x1xi32> to vector<8x8x1xi32>
    %8 = arith.cmpi slt, %5, %7 : vector<8x8x1xi32>
    %cst_5 = arith.constant 0xFF800000 : f32
    %9 = vector.shape_cast %8 : vector<8x8x1xi1> to vector<8x8x1xi1>
    %10 = vector.broadcast %9 : vector<8x8x1xi1> to vector<8x8x128xi1>
    %11 = vector.broadcast %cst_5 : f32 to vector<8x8x128xf32>
    %12 = arith.select %10, %3, %11 : vector<8x8x128xi1>, vector<8x8x128xf32>
    %cst_6 = arith.constant dense<0xFF800000> : vector<8x128xf32>
    %13 = vector.multi_reduction <maximumf>, %12, %cst_6 [1] : vector<8x8x128xf32> to vector<8x128xf32>
    %c0_i32 = arith.constant 0 : i32
    %14 = vector.broadcast %c0_i32 : i32 to vector<8x1xi32>
    %15 = arith.cmpi sgt, %4, %14 : vector<8x1xi32>
    %c0_7 = arith.constant 0 : index
    %c0_8 = arith.constant 0 : index
    %16 = vector.load %arg4[%c0_7, %c0_8] : memref<1x128xf32, #tpu.memory_space<vmem>>, vector<1x128xf32>
    %17 = vector.broadcast %16 : vector<1x128xf32> to vector<8x128xf32>
    %18 = arith.addf %13, %17 : vector<8x128xf32>
    %cst_9 = arith.constant 0.000000e+00 : f32
    %19 = vector.shape_cast %15 : vector<8x1xi1> to vector<8x1xi1>
    %20 = vector.broadcast %19 : vector<8x1xi1> to vector<8x128xi1>
    %21 = vector.broadcast %cst_9 : f32 to vector<8x128xf32>
    %22 = arith.select %20, %18, %21 : vector<8x128xi1>, vector<8x128xf32>
    %c0_10 = arith.constant 0 : index
    %c0_11 = arith.constant 0 : index
    %23 = vector.load %arg5[%c0_10, %c0_11] : memref<8x128xf32, #tpu.memory_space<vmem>>, vector<8x128xf32>
    tpu.vector_store %arg5[%c0_10, %c0_11], %22 {strides = array<i32>} : memref<8x128xf32, #tpu.memory_space<vmem>>, vector<8x128xf32>,
    return
  }
  func.func @transform_0(%arg0: i32) -> (i32, i32) {
    %c0_i32 = arith.constant 0 : i32
    %c0_i32_0 = arith.constant 0 : i32
    return %arg0, %c0_i32 : i32, i32
  }
  func.func @transform_1(%arg0: i32) -> (i32, i32) {
    %c0_i32 = arith.constant 0 : i32
    %c0_i32_0 = arith.constant 0 : i32
    return %arg0, %c0_i32 : i32, i32
  }
  func.func @transform_2(%arg0: i32) -> (i32, i32) {
    %c0_i32 = arith.constant 0 : i32
    %c0_i32_0 = arith.constant 0 : i32
    %c0_i32_1 = arith.constant 0 : i32
    return %c0_i32, %c0_i32_0 : i32, i32
  }
  func.func @transform_3(%arg0: i32) -> (i32, i32) {
    %c0_i32 = arith.constant 0 : i32
    %c0_i32_0 = arith.constant 0 : i32
    %c0_i32_1 = arith.constant 0 : i32
    return %c0_i32, %c0_i32_0 : i32, i32
  }
  func.func @transform_4(%arg0: i32) -> (i32, i32) {
    %c0_i32 = arith.constant 0 : i32
    %c0_i32_0 = arith.constant 0 : i32
    return %arg0, %c0_i32 : i32, i32
  }
}

</mosaic_0001>

<llo_original>
// kernel: tpu_custom_call.1
$region0: #{tpu_custom_call.1}
  #allocation0 [shape = 'u32[]', space=smem, size = 0x4, offset = 0x4, fixed_abs, tag = 'smem constant byte address 0x4 - core index']
  #allocation1 [shape = 'u32[144,128]{1,0:T(1,128)}', space=vmem, size = 0x12000, scoped, tag = 'internal scratch']
  %s0 = inlined_call_operand.vmem [shape: bf16[64,16], index: 0, kind: input, shape index: {}]
  %s1 = inlined_call_operand.vmem [shape: s32[8,1], index: 1, kind: input, shape index: {}]
  %s2 = inlined_call_operand.vmem [shape: bf16[16,128], index: 2, kind: input, shape index: {}]
  %s3 = inlined_call_operand.vmem [shape: f32[1,128], index: 3, kind: input, shape index: {}]
  %s4 = inlined_call_operand.hbm [shape: f32[8,128], index: 4, kind: output, shape index: {}]
  %s5 = sld [smem:[#allocation0]]
  $region26: #{tpu_custom_call.1} parent=0
    _
  %s7 = ssub.s32 1, %s5
  %s8 = scalar_select 0, %s7, %s5
  $region1: #{tpu_custom_call.1} parent=0
    #allocation2 [shape = 'u8[4096]{0}', space=vmem, size = 0x1000, scoped, tag = 'output window, operand 0, single buffered']
    #allocation3 [shape = 's32[1]{0}', space=sflag, size = 0x4, scoped, tag = 'scoped memory for tpu_custom_call.1']
    %9 = vsyncpa [#allocation3], 0
    // Predicated region
    $region2: #{tpu_custom_call.1} parent=1 // pred_check
      _
    $region3: #{tpu_custom_call.1} parent=1 // pred_check_branch
      %11 = sbr.rel (0) target = $region5
    $region4: #{tpu_custom_call.1} parent=1 // pred_region
      _
    $region5: #{tpu_custom_call.1} parent=1 // pred_fallthru
      _
    // Predicated region
    $region6: #{tpu_custom_call.1} parent=1 // pred_check
      _
    $region7: #{tpu_custom_call.1} parent=1 // pred_check_branch
      %13 = sbr.rel (0) target = $region9
    $region8: #{tpu_custom_call.1} parent=1 // pred_region
      _
    $region9: #{tpu_custom_call.1} parent=1 // pred_fallthru
      _
    // Predicated region
    $region10: #{tpu_custom_call.1} parent=1 // pred_check
      _
    $region11: #{tpu_custom_call.1} parent=1 // pred_check_branch
      %15 = sbr.rel (0) target = $region13
    $region12: #{tpu_custom_call.1} parent=1 // pred_region
      _
    $region13: #{tpu_custom_call.1} parent=1 // pred_fallthru
      _
    // Predicated region
    $region14: #{tpu_custom_call.1} parent=1 // pred_check
      _
    $region15: #{tpu_custom_call.1} parent=1 // pred_check_branch
      %17 = sbr.rel (0) target = $region17
    $region16: #{tpu_custom_call.1} parent=1 // pred_region
      _
    $region17: #{tpu_custom_call.1} parent=1 // pred_fallthru
      _
    %v19 = vld [vmem:[%s0] sm:$0xf]
    %v20 = vld [vmem:[%s0 + $0x4] sm:$0xf]
    %v21 = vld [vmem:[%s0 + $0x8] sm:$0xf]
    %v22 = vld [vmem:[%s0 + $0xc] sm:$0xf]
    %v23 = vld [vmem:[%s0 + $0x10] sm:$0xf]
    %v24 = vld [vmem:[%s0 + $0x14] sm:$0xf]
    %v25 = vld [vmem:[%s0 + $0x18] sm:$0xf]
    %v26 = vld [vmem:[%s0 + $0x1c] sm:$0xf]
    %v27 = vld [vmem:[%s2] sm:$0xf]
    %v28 = vld [vmem:[%s2 + $0x4] sm:$0xf]
    %v37 = vunpack.c.l.b16 %v19
    %v38 = vunpack.c.l.b16 %v20
    %v39 = vunpack.c.l.b16 %v21
    %v40 = vunpack.c.l.b16 %v22
    %v41 = vunpack.c.l.b16 %v23
    %v42 = vunpack.c.l.b16 %v24
    %v43 = vunpack.c.l.b16 %v25
    %v44 = vunpack.c.l.b16 %v26
    %v45 = vpack.c.b16 %v38, %v37
    %v46 = vpack.c.b16 %v40, %v39
    %v47 = vpack.c.b16 %v42, %v41
    %v48 = vpack.c.b16 %v44, %v43
    %v51 = vunpack.c.l.b16 %v27
    %v52 = vunpack.c.l.b16 %v28
    %v53 = vpack.c.b16 %v52, %v51
    %vm55 = vcmask 130048
    %v57 = vsel %vm55, %v45, 0
    %v60 = vsel %vm55, %v46, 0
    %v63 = vsel %vm55, %v47, 0
    %v66 = vsel %vm55, %v48, 0
    %68 = vmatprep.subr.bf16.mxu0 0
    %69 = vmatpush1.bf16.msra.mxu0 %v53
    %70 = vmatprep.subr.bf16.mxu0 0
    %71 = vmatpush1.bf16.msra.mxu0 0
    %72 = vmatprep.subr.bf16.mxu0 0
    %73 = vmatpush1.bf16.msra.mxu0 0
    %74 = vmatprep.subr.bf16.mxu0 0
    %75 = vmatpush1.bf16.msra.mxu0 0
    %76 = vmatprep.subr.bf16.mxu0 0
    %77 = vmatpush1.bf16.msra.mxu0 0
    %78 = vmatprep.subr.bf16.mxu0 0
    %79 = vmatpush1.bf16.msra.mxu0 0
    %80 = vmatprep.subr.bf16.mxu0 0
    %81 = vmatpush1.bf16.msra.mxu0 0
    %82 = vmatprep.subr.bf16.mxu0 0
    %83 = vmatpush1.bf16.msra.mxu0 0
    %84 = vmatprep.subr.bf16.mxu0 0
    %85 = vmatpush1.bf16.msra.mxu0 0
    %86 = vmatprep.subr.bf16.mxu0 0
    %87 = vmatpush1.bf16.msra.mxu0 0
    %88 = vmatprep.subr.bf16.mxu0 0
    %89 = vmatpush1.bf16.msra.mxu0 0
    %90 = vmatprep.subr.bf16.mxu0 0
    %91 = vmatpush1.bf16.msra.mxu0 0
    %92 = vmatprep.subr.bf16.mxu0 0
    %93 = vmatpush1.bf16.msra.mxu0 0
    %94 = vmatprep.subr.bf16.mxu0 0
    %95 = vmatpush1.bf16.msra.mxu0 0
    %96 = vmatprep.subr.bf16.mxu0 0
    %97 = vmatpush1.bf16.msra.mxu0 0
    %98 = vmatprep.subr.bf16.mxu0 0
    %99 = vmatpush1.bf16.msra.mxu0 0
    %100 = vmatprep.mubr.bf16.mxu0 0
    %101 = vmatmul.mubr.bf16.gmra.mrb[0].mxu0 %v57
    %v102 = vpop.f32.mrb[0].mxu0
    %v103 = vadd.f32 0.0, %v102
    %v104 = vpop.f32.mrb[0].mxu0
    %v105 = vpop.f32.mrb[0].mxu0
    %v106 = vadd.f32 0.0, %v105
    %v107 = vpop.f32.mrb[0].mxu0
    %108 = vmatprep.mubr.bf16.mxu0 0
    %109 = vmatmul.mubr.bf16.gmra.mrb[0].mxu0 %v60
    %v110 = vpop.f32.mrb[0].mxu0
    %v111 = vadd.f32 0.0, %v110
    %v112 = vpop.f32.mrb[0].mxu0
    %v113 = vpop.f32.mrb[0].mxu0
    %v114 = vadd.f32 0.0, %v113
    %v115 = vpop.f32.mrb[0].mxu0
    %116 = vmatprep.mubr.bf16.mxu0 0
    %117 = vmatmul.mubr.bf16.gmra.mrb[0].mxu0 %v63
    %v118 = vpop.f32.mrb[0].mxu0
    %v119 = vadd.f32 0.0, %v118
    %v120 = vpop.f32.mrb[0].mxu0
    %v121 = vpop.f32.mrb[0].mxu0
    %v122 = vadd.f32 0.0, %v121
    %v123 = vpop.f32.mrb[0].mxu0
    %124 = vmatprep.mubr.bf16.mxu0 0
    %125 = vmatmul.mubr.bf16.gmra.mrb[0].mxu0 %v66
    %v126 = vpop.f32.mrb[0].mxu0
    %v127 = vadd.f32 0.0, %v126
    %v128 = vpop.f32.mrb[0].mxu0
    %v129 = vpop.f32.mrb[0].mxu0
    %v130 = vadd.f32 0.0, %v129
    %v131 = vpop.f32.mrb[0].mxu0
    %132 = vdwg.mxu0
    %v133 = vld [vmem:[%s1] sm:$0xff]
    %v134 = vlaneseq
    %v135 = vshrl.u32 %v134, 7
    %v136 = vcombine.high %v133, %v133
    %v138 = vunpack.c.l.s4 1966171168
    %v139 = vunpack.c.0.s8 %v138
    %v140 = vlaneseq
    %v141 = vshrl.u32 %v140, 7
    %v142 = vsub.s32 %v139, %v141
    %v143 = vrot.slane %v133, %v142
    %v145 = vunpack.c.l.s4 1966171168
    %v146 = vunpack.c.0.s8 %v145
    %v147 = vlaneseq
    %v148 = vshrl.u32 %v147, 7
    %v149 = vsub.s32 %v146, %v148
    %v150 = vrot.slane %v136, %v149
    %v151 = vcombine.high %v143, %v143
    %v152 = vcombine.high %v150, %v150
    %v154 = vunpack.c.l.s4 1966171168
    %v155 = vunpack.c.0.s8 %v154
    %v156 = vlaneseq
    %v157 = vshrl.u32 %v156, 7
    %v158 = vsub.s32 %v155, %v157
    %v159 = vrot.slane %v143, %v158
    %v161 = vunpack.c.l.s4 1966171168
    %v162 = vunpack.c.0.s8 %v161
    %v163 = vlaneseq
    %v164 = vshrl.u32 %v163, 7
    %v165 = vsub.s32 %v162, %v164
    %v166 = vrot.slane %v150, %v165
    %v168 = vunpack.c.l.s4 1966171168
    %v169 = vunpack.c.0.s8 %v168
    %v170 = vlaneseq
    %v171 = vshrl.u32 %v170, 7
    %v172 = vsub.s32 %v169, %v171
    %v173 = vrot.slane %v151, %v172
    %v175 = vunpack.c.l.s4 1966171168
    %v176 = vunpack.c.0.s8 %v175
    %v177 = vlaneseq
    %v178 = vshrl.u32 %v177, 7
    %v179 = vsub.s32 %v176, %v178
    %v180 = vrot.slane %v152, %v179
    %v181 = vcombine.high %v159, %v159
    %v182 = vcombine.high %v166, %v166
    %v183 = vcombine.high %v173, %v173
    %v184 = vcombine.high %v180, %v180
    %v185 = vlaneseq
    %v186 = vshrl.u32 %v185, 7
    %v187 = vsub.s32 0, %v186
    %v188 = vrot.slane %v159, %v187
    %v189 = vlaneseq
    %v190 = vshrl.u32 %v189, 7
    %v191 = vsub.s32 0, %v190
    %v192 = vrot.slane %v173, %v191
    %v193 = vlaneseq
    %v194 = vshrl.u32 %v193, 7
    %v195 = vsub.s32 0, %v194
    %v196 = vrot.slane %v181, %v195
    %v197 = vlaneseq
    %v198 = vshrl.u32 %v197, 7
    %v199 = vsub.s32 0, %v198
    %v200 = vrot.slane %v183, %v199
    %v201 = vlaneseq
    %v202 = vshrl.u32 %v201, 7
    %v203 = vsub.s32 0, %v202
    %v204 = vrot.slane %v166, %v203
    %v205 = vlaneseq
    %v206 = vshrl.u32 %v205, 7
    %v207 = vsub.s32 0, %v206
    %v208 = vrot.slane %v180, %v207
    %v209 = vlaneseq
    %v210 = vshrl.u32 %v209, 7
    %v211 = vsub.s32 0, %v210
    %v212 = vrot.slane %v182, %v211
    %v213 = vlaneseq
    %v214 = vshrl.u32 %v213, 7
    %v215 = vsub.s32 0, %v214
    %v216 = vrot.slane %v184, %v215
    %vm217 = vcmp.lt.s32.totalorder %v135, %v188
    %vm218 = vcmp.lt.s32.totalorder %v135, %v192
    %vm219 = vcmp.lt.s32.totalorder %v135, %v196
    %vm220 = vcmp.lt.s32.totalorder %v135, %v200
    %vm221 = vcmp.lt.s32.totalorder %v135, %v204
    %vm222 = vcmp.lt.s32.totalorder %v135, %v208
    %vm223 = vcmp.lt.s32.totalorder %v135, %v212
    %vm224 = vcmp.lt.s32.totalorder %v135, %v216
    %v225 = vsel %vm217, 1, 0
    %v226 = vsel %vm218, 1, 0
    %v227 = vsel %vm219, 1, 0
    %v228 = vsel %vm220, 1, 0
    %v229 = vsel %vm221, 1, 0
    %v230 = vsel %vm222, 1, 0
    %v231 = vsel %vm223, 1, 0
    %v232 = vsel %vm224, 1, 0
    %233 = vset.pattern.permute.xlu0 0
    %234 = vperm.xlu0 %233, %v225
    %v235 = vpop.permute.xlu0 %234
    %236 = vset.pattern.permute.xlu0 0
    %237 = vperm.xlu0 %236, %v226
    %v238 = vpop.permute.xlu0 %237
    %239 = vset.pattern.permute.xlu0 0
    %240 = vperm.xlu0 %239, %v227
    %v241 = vpop.permute.xlu0 %240
    %242 = vset.pattern.permute.xlu0 0
    %243 = vperm.xlu0 %242, %v228
    %v244 = vpop.permute.xlu0 %243
    %245 = vset.pattern.permute.xlu0 0
    %246 = vperm.xlu0 %245, %v229
    %v247 = vpop.permute.xlu0 %246
    %248 = vset.pattern.permute.xlu0 0
    %249 = vperm.xlu0 %248, %v230
    %v250 = vpop.permute.xlu0 %249
    %251 = vset.pattern.permute.xlu0 0
    %252 = vperm.xlu0 %251, %v231
    %v253 = vpop.permute.xlu0 %252
    %254 = vset.pattern.permute.xlu0 0
    %255 = vperm.xlu0 %254, %v232
    %v256 = vpop.permute.xlu0 %255
    %vm257 = vcmp.eq.s32.totalorder %v235, 1
    %vm258 = vcmp.eq.s32.totalorder %v238, 1
    %vm259 = vcmp.eq.s32.totalorder %v241, 1
    %vm260 = vcmp.eq.s32.totalorder %v244, 1
    %vm261 = vcmp.eq.s32.totalorder %v247, 1
    %vm262 = vcmp.eq.s32.totalorder %v250, 1
    %vm263 = vcmp.eq.s32.totalorder %v253, 1
    %vm264 = vcmp.eq.s32.totalorder %v256, 1
    %v265 = vsel %vm257, %v103, -inf
    %v266 = vsel %vm258, %v106, -inf
    %v267 = vsel %vm259, %v111, -inf
    %v268 = vsel %vm260, %v114, -inf
    %v269 = vsel %vm261, %v119, -inf
    %v270 = vsel %vm262, %v122, -inf
    %v271 = vsel %vm263, %v127, -inf
    %v272 = vsel %vm264, %v130, -inf
    %v273 = vrot.slane %v265, 4
    %v274 = vmax.f32 %v265, %v273
    %v275 = vrot.slane %v274, 2
    %v276 = vmax.f32 %v274, %v275
    %v277 = vrot.slane %v276, 1
    %v278 = vmax.f32 %v276, %v277
    %v279 = vrot.slane %v266, 4
    %v280 = vmax.f32 %v266, %v279
    %v281 = vrot.slane %v280, 2
    %v282 = vmax.f32 %v280, %v281
    %v283 = vrot.slane %v282, 1
    %v284 = vmax.f32 %v282, %v283
    %v285 = vrot.slane %v267, 4
    %v286 = vmax.f32 %v267, %v285
    %v287 = vrot.slane %v286, 2
    %v288 = vmax.f32 %v286, %v287
    %v289 = vrot.slane %v288, 1
    %v290 = vmax.f32 %v288, %v289
    %v291 = vrot.slane %v268, 4
    %v292 = vmax.f32 %v268, %v291
    %v293 = vrot.slane %v292, 2
    %v294 = vmax.f32 %v292, %v293
    %v295 = vrot.slane %v294, 1
    %v296 = vmax.f32 %v294, %v295
    %v297 = vrot.slane %v269, 4
    %v298 = vmax.f32 %v269, %v297
    %v299 = vrot.slane %v298, 2
    %v300 = vmax.f32 %v298, %v299
    %v301 = vrot.slane %v300, 1
    %v302 = vmax.f32 %v300, %v301
    %v303 = vrot.slane %v270, 4
    %v304 = vmax.f32 %v270, %v303
    %v305 = vrot.slane %v304, 2
    %v306 = vmax.f32 %v304, %v305
    %v307 = vrot.slane %v306, 1
    %v308 = vmax.f32 %v306, %v307
    %v309 = vrot.slane %v271, 4
    %v310 = vmax.f32 %v271, %v309
    %v311 = vrot.slane %v310, 2
    %v312 = vmax.f32 %v310, %v311
    %v313 = vrot.slane %v312, 1
    %v314 = vmax.f32 %v312, %v313
    %v315 = vrot.slane %v272, 4
    %v316 = vmax.f32 %v272, %v315
    %v317 = vrot.slane %v316, 2
    %v318 = vmax.f32 %v316, %v317
    %v319 = vrot.slane %v318, 1
    %v320 = vmax.f32 %v318, %v319
    %vm321 = vcmp.gt.s32.totalorder %v133, 0
    %v322 = vld [vmem:[%s3] sm:$0x1]
    %v324 = vlaneseq
    %v325 = vshrl.u32 %v324, 7
    %v326 = vsub.s32 0, %v325
    %v327 = vrot.slane %v322, %v326
    %v329 = vadd.f32 %v278, %v327
    %v330 = vadd.f32 %v284, %v327
    %v331 = vadd.f32 %v290, %v327
    %v332 = vadd.f32 %v296, %v327
    %v333 = vadd.f32 %v302, %v327
    %v334 = vadd.f32 %v308, %v327
    %v335 = vadd.f32 %v314, %v327
    %v336 = vadd.f32 %v320, %v327
    %v337 = vsel %vm321, 1, 0
    %338 = vset.pattern.permute.xlu0 0
    %339 = vperm.xlu0 %338, %v337
    %v340 = vpop.permute.xlu0 %339
    %vm341 = vcmp.eq.s32.totalorder %v340, 1
    %v350 = vrot.slane %v330, 7
    %vm351 = vcmask 1041409
    %v352 = vsel %vm351, %v350, %v329
    %v353 = vrot.slane %v331, 6
    %vm354 = vcmask 1042434
    %v355 = vsel %vm354, %v353, %v352
    %v356 = vrot.slane %v332, 5
    %vm357 = vcmask 1043459
    %v358 = vsel %vm357, %v356, %v355
    %v359 = vrot.slane %v333, 4
    %vm360 = vcmask 1044484
    %v361 = vsel %vm360, %v359, %v358
    %v362 = vrot.slane %v334, 3
    %vm363 = vcmask 1045509
    %v364 = vsel %vm363, %v362, %v361
    %v365 = vrot.slane %v335, 2
    %vm366 = vcmask 1046534
    %v367 = vsel %vm366, %v365, %v364
    %v368 = vrot.slane %v336, 1
    %vm369 = vcmask 1047559
    %v370 = vsel %vm369, %v368, %v367
    %v372 = vsel %vm341, %v370, 0.0
    %373 = vst [vmem:[#allocation2] sm:$0xff] %v372
    // Predicated region
    $region18: #{tpu_custom_call.1} parent=1 // pred_check
      _
    $region19: #{tpu_custom_call.1} parent=1 // pred_check_branch
      %375 = sbr.rel (0) target = $region21
    $region20: #{tpu_custom_call.1} parent=1 // pred_region
      %s377 = ssub.s32 128, 128
      %378 = vsyncadd [#allocation3], %s377
      %s380 = sshll.u32 [#allocation2], 4
      %s381 = int_to_ptr.vmem [resolvable:$true] %s380
      %383 = dma.vmem_to_hbm [thread:$0]  %s381, 128, %s4, [#allocation3]
    $region21: #{tpu_custom_call.1} parent=1 // pred_fallthru
      _
    // Predicated region
    $region22: #{tpu_custom_call.1} parent=1 // pred_check
      _
    $region23: #{tpu_custom_call.1} parent=1 // pred_check_branch
      %385 = sbr.rel (0) target = $region25
    $region24: #{tpu_custom_call.1} parent=1 // pred_region
      %386 = dma.done [#allocation3], 128
    $region25: #{tpu_custom_call.1} parent=1 // pred_fallthru
      _
    %387 = vsyncpa [#allocation3], 1

</llo_original>
